<compile_context>
chip_gen: v7x
topology: tpu7x:2x2x1
jax: 0.10.0
libtpu: 0.0.40
codegen_flags: <defaults>
</compile_context>

<pallas_src>
import functools

import jax
import jax.numpy as jnp
from jax import lax
from jax.experimental import pallas as pl
from jax.experimental.pallas import tpu as pltpu


def _round_up(a, b):
    return (a + b - 1) // b * b


def _axis_onehot(coord_row, mn, mx, n, t):
    """Transposed 2-tap interpolation matrix for one axis.

    coord_row: (1, T) world coordinates for this axis.
    Returns (n, T) f32 where column t has weight (1 - f) at row i0[t] and f at
    row i0[t] + 1 (align_corners=True, border clamp, n == 1 safe).
    """
    inv = 1.0 / (mx - mn) if mx > mn else 0.0            # degenerate-bounds guard
    u = (coord_row - mn) * inv                           # nominal [0, 1]
    s = jnp.clip(u * (n - 1), 0.0, float(n - 1))         # border clamp of src coord
    i0f = jnp.clip(jnp.floor(s), 0.0, float(max(n - 2, 0)))
    i0 = i0f.astype(jnp.int32)                           # (1, T)
    f = s - i0f                                          # (1, T)
    rows = lax.broadcasted_iota(jnp.int32, (n, t), 0)    # axis index on sublanes
    return (jnp.where(rows == i0, 1.0 - f, 0.0)
            + jnp.where(rows == i0 + 1, f, 0.0))         # (n, T)


def _dense_grid_kernel(xyz_ref, grid_ref, out_ref, *, dims, xyz_min, xyz_max):
    nx, ny, nz = dims
    t = xyz_ref.shape[1]

    wx = _axis_onehot(xyz_ref[0:1, :], xyz_min[0], xyz_max[0], nx, t)    # (nx, T)
    wy = _axis_onehot(xyz_ref[1:2, :], xyz_min[1], xyz_max[1], ny, t)    # (ny, T)
    wz = _axis_onehot(xyz_ref[2:3, :], xyz_min[2], xyz_max[2], nz, t)    # (nz, T)

    # Combined x/y weights: 2 taps in x times 2 taps in y -> (nx*ny, T).
    wxy = (wx[:, None, :] * wy[None, :, :]).reshape(nx * ny, t)

    outs = []
    for c in range(grid_ref.shape[0]):
        # x/y interpolation on the MXU: (nz, nx*ny) @ (nx*ny, T) -> (nz, T).
        planes = jnp.dot(grid_ref[c], wxy, preferred_element_type=jnp.float32)
        # z interpolation: 2-tap weighted sum on the VPU.
        outs.append(jnp.sum(planes * wz, axis=0, keepdims=True))        # (1, T)
    res = outs[0] if len(outs) == 1 else jnp.concatenate(outs, axis=0)  # (C, T)
    out_ref[...] = res.astype(out_ref.dtype)


def dense_grid_forward(xyz, grid, xyz_min, xyz_max, *, tile=512):
    """Pallas equivalent of DenseGrid.forward(xyz) (with_grad=False).

    xyz  : (*shape, 3) float32 world coordinates.
    grid : (1, C, Nx, Ny, Nz) float32 voxel grid (torch NCDHW layout).
    Returns (*shape, C), or (*shape,) if C == 1.
    """
    assert grid.ndim == 5 and grid.shape[0] == 1
    channels = int(grid.shape[1])
    nx, ny, nz = int(grid.shape[2]), int(grid.shape[3]), int(grid.shape[4])

    shape = xyz.shape[:-1]
    pts = xyz.reshape(-1, 3).astype(jnp.float32)
    npts = pts.shape[0]

    # Points live on the 128-lane axis; tile must be a multiple of 128.
    tile = max(128, (int(tile) // 128) * 128)
    tile = min(tile, max(128, pl.cdiv(npts, 128) * 128))
    npad = pl.cdiv(npts, tile) * tile

    pts_t = jnp.transpose(pts)                      # (3, npts): lane-dense coords
    if npad != npts:
        pts_t = jnp.pad(pts_t, ((0, 0), (0, npad - npts)))

    # (1, C, Nx, Ny, Nz) -> (C, Nz, Nx*Ny): z on the matmul M axis, flat (x, y)
    # on the contraction axis.  Done once in the wrapper (XLA), not per tile.
    g2 = jnp.transpose(grid[0], (0, 3, 1, 2)).reshape(channels, nz, nx * ny)
    g2 = g2.astype(jnp.float32)

    kernel = functools.partial(
        _dense_grid_kernel,
        dims=(nx, ny, nz),
        xyz_min=tuple(float(v) for v in xyz_min),
        xyz_max=tuple(float(v) for v in xyz_max),
    )

    # Rough VMEM budget: resident grid (single copy) + per-tile weight matrices
    # and matmul products + double-buffered coord/output blocks; 2x headroom,
    # clamped to stay within every generation's physical VMEM.
    grid_b = channels * nz * _round_up(nx * ny, 128) * 4
    wxy_b = _round_up(nx * ny, 8) * tile * 4
    axes_b = (_round_up(nx, 8) + _round_up(ny, 8) + 2 * _round_up(nz, 8)) * tile * 4
    io_b = 2 * (_round_up(3, 8) + _round_up(channels, 8)) * tile * 4
    est = grid_b + 3 * wxy_b + axes_b + io_b
    vmem_limit = int(min(127 * 2**20, max(32 * 2**20, 2 * est)))

    out = pl.pallas_call(
        kernel,
        out_shape=jax.ShapeDtypeStruct((channels, npad), jnp.float32),
        grid_spec=pltpu.PrefetchScalarGridSpec(
            num_scalar_prefetch=0,
            grid=(npad // tile,),
            in_specs=[
                pl.BlockSpec((3, tile), lambda i: (0, i)),
                # Whole grid resident in VMEM once; not pipelined/double-buffered.
                pl.BlockSpec(memory_space=pltpu.MemorySpace.VMEM),
            ],
            out_specs=pl.BlockSpec((channels, tile), lambda i: (0, i)),
        ),
        compiler_params=pltpu.CompilerParams(
            dimension_semantics=("parallel",),   # point tiles shard across cores
            vmem_limit_bytes=vmem_limit,
        ),
    )(pts_t, g2)

    out = jnp.transpose(out[:, :npts]).reshape(*shape, channels)
    if channels == 1:
        out = out[..., 0]
    return out


def dense_grid_forward_ref(xyz, grid, xyz_min, xyz_max):
    """Pure-JAX reference (trilinear, border padding, align_corners=True)."""
    channels = grid.shape[1]
    nx, ny, nz = grid.shape[2], grid.shape[3], grid.shape[4]
    shape = xyz.shape[:-1]
    pts = xyz.reshape(-1, 3).astype(jnp.float32)

    def axis(v, mn, mx, n):
        inv = 1.0 / (mx - mn) if mx > mn else 0.0
        s = jnp.clip((v - mn) * inv * (n - 1), 0.0, float(n - 1))
        i0 = jnp.clip(jnp.floor(s), 0.0, float(max(n - 2, 0))).astype(jnp.int32)
        return i0, s - i0.astype(jnp.float32)

    ix0, fx = axis(pts[:, 0], float(xyz_min[0]), float(xyz_max[0]), nx)
    iy0, fy = axis(pts[:, 1], float(xyz_min[1]), float(xyz_max[1]), ny)
    iz0, fz = axis(pts[:, 2], float(xyz_min[2]), float(xyz_max[2]), nz)

    g = grid[0]  # (C, Nx, Ny, Nz)
    out = jnp.zeros((pts.shape[0], channels), jnp.float32)
    for a in (0, 1):
        ix = jnp.minimum(ix0 + a, nx - 1)
        wxv = fx if a == 1 else (1.0 - fx)
        for b in (0, 1):
            iy = jnp.minimum(iy0 + b, ny - 1)
            wyv = fy if b == 1 else (1.0 - fy)
            for c in (0, 1):
                iz = jnp.minimum(iz0 + c, nz - 1)
                wzv = fz if c == 1 else (1.0 - fz)
                vals = g[:, ix, iy, iz].T            # (Npts, C)
                out = out + (wxv * wyv * wzv)[:, None] * vals
    out = out.reshape(*shape, channels)
    if channels == 1:
        out = out[..., 0]
    return out


if __name__ == "__main__":
    key = jax.random.PRNGKey(0)
    k_grid, k_xyz, k_grid2, k_xyz2 = jax.random.split(key, 4)

    # --- test 1: C=4, cubic 8^3 grid, symmetric bounds, points outside the box
    channels = 4
    world_size = (8, 8, 8)
    xyz_min = (-1.0, -1.0, -1.0)
    xyz_max = (1.0, 1.0, 1.0)
    grid = jax.random.normal(k_grid, (1, channels, *world_size), dtype=jnp.float32)
    xyz = jax.random.uniform(
        k_xyz, (2, 64, 3), dtype=jnp.float32, minval=-1.2, maxval=1.2
    )

    out = jax.block_until_ready(dense_grid_forward(xyz, grid, xyz_min, xyz_max))
    ref = jax.block_until_ready(dense_grid_forward_ref(xyz, grid, xyz_min, xyz_max))
    assert out.shape == (2, 64, channels), out.shape
    assert jnp.allclose(out, ref, atol=1e-5, rtol=1e-5), float(jnp.max(jnp.abs(out - ref)))

    # --- test 2: C=1 (density grid), non-cubic dims, asymmetric bounds,
    #             point count not a multiple of the tile (exercises padding)
    world_size2 = (4, 8, 6)
    xyz_min2 = (-1.0, -0.5, 0.0)
    xyz_max2 = (1.0, 1.5, 2.0)
    grid2 = jax.random.normal(k_grid2, (1, 1, *world_size2), dtype=jnp.float32)
    xyz2 = jax.random.uniform(
        k_xyz2, (3, 50, 3), dtype=jnp.float32, minval=-0.6, maxval=2.3
    )

    out2 = jax.block_until_ready(dense_grid_forward(xyz2, grid2, xyz_min2, xyz_max2))
    ref2 = jax.block_until_ready(dense_grid_forward_ref(xyz2, grid2, xyz_min2, xyz_max2))
    assert out2.shape == (3, 50), out2.shape
    assert jnp.allclose(out2, ref2, atol=1e-5, rtol=1e-5), float(jnp.max(jnp.abs(out2 - ref2)))

    # TODO(synk): with_grad=True / compute_grad (aten::grid_sampler_3d_backward
    # analytic gradient w.r.t. coordinates) not implemented; forward only.
    print("KERNEL_OK")
</pallas_src>

<mosaic_0001>
module attributes {stable_mosaic.version = 11 : i64} {
  func.func @_dense_grid_kernel(%arg0: i32, %arg1: memref<3x128xf32, #tpu.memory_space<vmem>>, %arg2: memref<4x8x64xf32, #tpu.memory_space<vmem>>, %arg3: memref<4x128xf32, #tpu.memory_space<vmem>>) attributes {dimension_semantics = [#tpu.dimension_semantics<parallel>], iteration_bounds = array<i64: 1>, scalar_prefetch = 0 : i64, scratch_operands = 0 : i64, tpu.core_type = #tpu.core_type<tc>, window_params = [{transform_indices = @transform_0, window_bounds = array<i64: 3, 128>}, {pipeline_mode = #tpu.pipeline_mode<synchronous>, transform_indices = @transform_1, window_bounds = array<i64: 4, 8, 64>}, {transform_indices = @transform_2, window_bounds = array<i64: 4, 128>}]} {
    %c0 = arith.constant 0 : index
    %c0_0 = arith.constant 0 : index
    %0 = vector.load %arg1[%c0, %c0_0] : memref<3x128xf32, #tpu.memory_space<vmem>>, vector<1x128xf32>
    %cst = arith.constant -1.000000e+00 : f32
    %1 = vector.broadcast %cst : f32 to vector<1x128xf32>
    %2 = arith.subf %0, %1 : vector<1x128xf32>
    %cst_1 = arith.constant 5.000000e-01 : f32
    %3 = vector.broadcast %cst_1 : f32 to vector<1x128xf32>
    %4 = arith.mulf %2, %3 : vector<1x128xf32>
    %cst_2 = arith.constant 7.000000e+00 : f32
    %5 = vector.broadcast %cst_2 : f32 to vector<1x128xf32>
    %6 = arith.mulf %4, %5 : vector<1x128xf32>
    %cst_3 = arith.constant 0.000000e+00 : f32
    %cst_4 = arith.constant 7.000000e+00 : f32
    %7 = vector.broadcast %cst_3 : f32 to vector<1x128xf32>
    %8 = arith.maximumf %7, %6 : vector<1x128xf32>
    %9 = vector.broadcast %cst_4 : f32 to vector<1x128xf32>
    %10 = arith.minimumf %9, %8 : vector<1x128xf32>
    %11 = math.floor %10 : vector<1x128xf32>
    %cst_5 = arith.constant 0.000000e+00 : f32
    %cst_6 = arith.constant 6.000000e+00 : f32
    %12 = vector.broadcast %cst_5 : f32 to vector<1x128xf32>
    %13 = arith.maximumf %12, %11 : vector<1x128xf32>
    %14 = vector.broadcast %cst_6 : f32 to vector<1x128xf32>
    %15 = arith.minimumf %14, %13 : vector<1x128xf32>
    %16 = arith.fptosi %15 : vector<1x128xf32> to vector<1x128xi32>
    %17 = arith.subf %10, %15 : vector<1x128xf32>
    %18 = tpu.iota {dimensions = array<i32: 0>} : vector<8x128xi32>
    %19 = vector.broadcast %16 : vector<1x128xi32> to vector<8x128xi32>
    %20 = arith.cmpi eq, %18, %19 : vector<8x128xi32>
    %cst_7 = arith.constant 1.000000e+00 : f32
    %21 = vector.broadcast %cst_7 : f32 to vector<1x128xf32>
    %22 = arith.subf %21, %17 : vector<1x128xf32>
    %cst_8 = arith.constant 0.000000e+00 : f32
    %23 = vector.shape_cast %22 : vector<1x128xf32> to vector<1x128xf32>
    %24 = vector.broadcast %23 : vector<1x128xf32> to vector<8x128xf32>
    %25 = vector.broadcast %cst_8 : f32 to vector<8x128xf32>
    %26 = arith.select %20, %24, %25 : vector<8x128xi1>, vector<8x128xf32>
    %c1_i32 = arith.constant 1 : i32
    %27 = vector.broadcast %c1_i32 : i32 to vector<1x128xi32>
    %28 = arith.addi %16, %27 : vector<1x128xi32>
    %29 = vector.broadcast %28 : vector<1x128xi32> to vector<8x128xi32>
    %30 = arith.cmpi eq, %18, %29 : vector<8x128xi32>
    %cst_9 = arith.constant 0.000000e+00 : f32
    %31 = vector.shape_cast %17 : vector<1x128xf32> to vector<1x128xf32>
    %32 = vector.broadcast %31 : vector<1x128xf32> to vector<8x128xf32>
    %33 = vector.broadcast %cst_9 : f32 to vector<8x128xf32>
    %34 = arith.select %30, %32, %33 : vector<8x128xi1>, vector<8x128xf32>
    %35 = arith.addf %26, %34 : vector<8x128xf32>
    %c1 = arith.constant 1 : index
    %c0_10 = arith.constant 0 : index
    %36 = vector.load %arg1[%c1, %c0_10] : memref<3x128xf32, #tpu.memory_space<vmem>>, vector<1x128xf32>
    %cst_11 = arith.constant -1.000000e+00 : f32
    %37 = vector.broadcast %cst_11 : f32 to vector<1x128xf32>
    %38 = arith.subf %36, %37 : vector<1x128xf32>
    %cst_12 = arith.constant 5.000000e-01 : f32
    %39 = vector.broadcast %cst_12 : f32 to vector<1x128xf32>
    %40 = arith.mulf %38, %39 : vector<1x128xf32>
    %cst_13 = arith.constant 7.000000e+00 : f32
    %41 = vector.broadcast %cst_13 : f32 to vector<1x128xf32>
    %42 = arith.mulf %40, %41 : vector<1x128xf32>
    %cst_14 = arith.constant 0.000000e+00 : f32
    %cst_15 = arith.constant 7.000000e+00 : f32
    %43 = vector.broadcast %cst_14 : f32 to vector<1x128xf32>
    %44 = arith.maximumf %43, %42 : vector<1x128xf32>
    %45 = vector.broadcast %cst_15 : f32 to vector<1x128xf32>
    %46 = arith.minimumf %45, %44 : vector<1x128xf32>
    %47 = math.floor %46 : vector<1x128xf32>
    %cst_16 = arith.constant 0.000000e+00 : f32
    %cst_17 = arith.constant 6.000000e+00 : f32
    %48 = vector.broadcast %cst_16 : f32 to vector<1x128xf32>
    %49 = arith.maximumf %48, %47 : vector<1x128xf32>
    %50 = vector.broadcast %cst_17 : f32 to vector<1x128xf32>
    %51 = arith.minimumf %50, %49 : vector<1x128xf32>
    %52 = arith.fptosi %51 : vector<1x128xf32> to vector<1x128xi32>
    %53 = arith.subf %46, %51 : vector<1x128xf32>
    %54 = tpu.iota {dimensions = array<i32: 0>} : vector<8x128xi32>
    %55 = vector.broadcast %52 : vector<1x128xi32> to vector<8x128xi32>
    %56 = arith.cmpi eq, %54, %55 : vector<8x128xi32>
    %cst_18 = arith.constant 1.000000e+00 : f32
    %57 = vector.broadcast %cst_18 : f32 to vector<1x128xf32>
    %58 = arith.subf %57, %53 : vector<1x128xf32>
    %cst_19 = arith.constant 0.000000e+00 : f32
    %59 = vector.shape_cast %58 : vector<1x128xf32> to vector<1x128xf32>
    %60 = vector.broadcast %59 : vector<1x128xf32> to vector<8x128xf32>
    %61 = vector.broadcast %cst_19 : f32 to vector<8x128xf32>
    %62 = arith.select %56, %60, %61 : vector<8x128xi1>, vector<8x128xf32>
    %c1_i32_20 = arith.constant 1 : i32
    %63 = vector.broadcast %c1_i32_20 : i32 to vector<1x128xi32>
    %64 = arith.addi %52, %63 : vector<1x128xi32>
    %65 = vector.broadcast %64 : vector<1x128xi32> to vector<8x128xi32>
    %66 = arith.cmpi eq, %54, %65 : vector<8x128xi32>
    %cst_21 = arith.constant 0.000000e+00 : f32
    %67 = vector.shape_cast %53 : vector<1x128xf32> to vector<1x128xf32>
    %68 = vector.broadcast %67 : vector<1x128xf32> to vector<8x128xf32>
    %69 = vector.broadcast %cst_21 : f32 to vector<8x128xf32>
    %70 = arith.select %66, %68, %69 : vector<8x128xi1>, vector<8x128xf32>
    %71 = arith.addf %62, %70 : vector<8x128xf32>
    %c2 = arith.constant 2 : index
    %c0_22 = arith.constant 0 : index
    %72 = vector.load %arg1[%c2, %c0_22] : memref<3x128xf32, #tpu.memory_space<vmem>>, vector<1x128xf32>
    %cst_23 = arith.constant -1.000000e+00 : f32
    %73 = vector.broadcast %cst_23 : f32 to vector<1x128xf32>
    %74 = arith.subf %72, %73 : vector<1x128xf32>
    %cst_24 = arith.constant 5.000000e-01 : f32
    %75 = vector.broadcast %cst_24 : f32 to vector<1x128xf32>
    %76 = arith.mulf %74, %75 : vector<1x128xf32>
    %cst_25 = arith.constant 7.000000e+00 : f32
    %77 = vector.broadcast %cst_25 : f32 to vector<1x128xf32>
    %78 = arith.mulf %76, %77 : vector<1x128xf32>
    %cst_26 = arith.constant 0.000000e+00 : f32
    %cst_27 = arith.constant 7.000000e+00 : f32
    %79 = vector.broadcast %cst_26 : f32 to vector<1x128xf32>
    %80 = arith.maximumf %79, %78 : vector<1x128xf32>
    %81 = vector.broadcast %cst_27 : f32 to vector<1x128xf32>
    %82 = arith.minimumf %81, %80 : vector<1x128xf32>
    %83 = math.floor %82 : vector<1x128xf32>
    %cst_28 = arith.constant 0.000000e+00 : f32
    %cst_29 = arith.constant 6.000000e+00 : f32
    %84 = vector.broadcast %cst_28 : f32 to vector<1x128xf32>
    %85 = arith.maximumf %84, %83 : vector<1x128xf32>
    %86 = vector.broadcast %cst_29 : f32 to vector<1x128xf32>
    %87 = arith.minimumf %86, %85 : vector<1x128xf32>
    %88 = arith.fptosi %87 : vector<1x128xf32> to vector<1x128xi32>
    %89 = arith.subf %82, %87 : vector<1x128xf32>
    %90 = tpu.iota {dimensions = array<i32: 0>} : vector<8x128xi32>
    %91 = vector.broadcast %88 : vector<1x128xi32> to vector<8x128xi32>
    %92 = arith.cmpi eq, %90, %91 : vector<8x128xi32>
    %cst_30 = arith.constant 1.000000e+00 : f32
    %93 = vector.broadcast %cst_30 : f32 to vector<1x128xf32>
    %94 = arith.subf %93, %89 : vector<1x128xf32>
    %cst_31 = arith.constant 0.000000e+00 : f32
    %95 = vector.shape_cast %94 : vector<1x128xf32> to vector<1x128xf32>
    %96 = vector.broadcast %95 : vector<1x128xf32> to vector<8x128xf32>
    %97 = vector.broadcast %cst_31 : f32 to vector<8x128xf32>
    %98 = arith.select %92, %96, %97 : vector<8x128xi1>, vector<8x128xf32>
    %c1_i32_32 = arith.constant 1 : i32
    %99 = vector.broadcast %c1_i32_32 : i32 to vector<1x128xi32>
    %100 = arith.addi %88, %99 : vector<1x128xi32>
    %101 = vector.broadcast %100 : vector<1x128xi32> to vector<8x128xi32>
    %102 = arith.cmpi eq, %90, %101 : vector<8x128xi32>
    %cst_33 = arith.constant 0.000000e+00 : f32
    %103 = vector.shape_cast %89 : vector<1x128xf32> to vector<1x128xf32>
    %104 = vector.broadcast %103 : vector<1x128xf32> to vector<8x128xf32>
    %105 = vector.broadcast %cst_33 : f32 to vector<8x128xf32>
    %106 = arith.select %102, %104, %105 : vector<8x128xi1>, vector<8x128xf32>
    %107 = arith.addf %98, %106 : vector<8x128xf32>
    %108 = vector.shape_cast %35 : vector<8x128xf32> to vector<8x1x128xf32>
    %109 = vector.shape_cast %71 : vector<8x128xf32> to vector<1x8x128xf32>
    %110 = vector.broadcast %108 : vector<8x1x128xf32> to vector<8x8x128xf32>
    %111 = vector.broadcast %109 : vector<1x8x128xf32> to vector<8x8x128xf32>
    %112 = arith.mulf %110, %111 : vector<8x8x128xf32>
    %113 = vector.shape_cast %112 : vector<8x8x128xf32> to vector<64x128xf32>
    %c0_34 = arith.constant 0 : index
    %c0_35 = arith.constant 0 : index
    %c0_36 = arith.constant 0 : index
    %114 = vector.load %arg2[%c0_34, %c0_35, %c0_36] : memref<4x8x64xf32, #tpu.memory_space<vmem>>, vector<1x8x64xf32>
    %115 = vector.shape_cast %114 : vector<1x8x64xf32> to vector<8x64xf32>
    %cst_37 = arith.constant dense<0.000000e+00> : vector<8x128xf32>
    %116 = tpu.matmul %115, %113, %cst_37 {dimension_numbers = #tpu.dot_dimension_numbers<[1], [0], [0], [1], [0, 0, 1, 1], [], []>} : vector<8x64xf32>, vector<64x128xf32>, vector<8x128xf32> -> vector<8x128xf32>
    %117 = arith.mulf %116, %107 : vector<8x128xf32>
    %cst_38 = arith.constant dense<0.000000e+00> : vector<128xf32>
    %118 = vector.multi_reduction <add>, %117, %cst_38 [0] : vector<8x128xf32> to vector<128xf32>
    %119 = vector.shape_cast %118 : vector<128xf32> to vector<1x128xf32>
    %c1_39 = arith.constant 1 : index
    %c0_40 = arith.constant 0 : index
    %c0_41 = arith.constant 0 : index
    %120 = vector.load %arg2[%c1_39, %c0_40, %c0_41] : memref<4x8x64xf32, #tpu.memory_space<vmem>>, vector<1x8x64xf32>
    %121 = vector.shape_cast %120 : vector<1x8x64xf32> to vector<8x64xf32>
    %cst_42 = arith.constant dense<0.000000e+00> : vector<8x128xf32>
    %122 = tpu.matmul %121, %113, %cst_42 {dimension_numbers = #tpu.dot_dimension_numbers<[1], [0], [0], [1], [0, 0, 1, 1], [], []>} : vector<8x64xf32>, vector<64x128xf32>, vector<8x128xf32> -> vector<8x128xf32>
    %123 = arith.mulf %122, %107 : vector<8x128xf32>
    %cst_43 = arith.constant dense<0.000000e+00> : vector<128xf32>
    %124 = vector.multi_reduction <add>, %123, %cst_43 [0] : vector<8x128xf32> to vector<128xf32>
    %125 = vector.shape_cast %124 : vector<128xf32> to vector<1x128xf32>
    %c2_44 = arith.constant 2 : index
    %c0_45 = arith.constant 0 : index
    %c0_46 = arith.constant 0 : index
    %126 = vector.load %arg2[%c2_44, %c0_45, %c0_46] : memref<4x8x64xf32, #tpu.memory_space<vmem>>, vector<1x8x64xf32>
    %127 = vector.shape_cast %126 : vector<1x8x64xf32> to vector<8x64xf32>
    %cst_47 = arith.constant dense<0.000000e+00> : vector<8x128xf32>
    %128 = tpu.matmul %127, %113, %cst_47 {dimension_numbers = #tpu.dot_dimension_numbers<[1], [0], [0], [1], [0, 0, 1, 1], [], []>} : vector<8x64xf32>, vector<64x128xf32>, vector<8x128xf32> -> vector<8x128xf32>
    %129 = arith.mulf %128, %107 : vector<8x128xf32>
    %cst_48 = arith.constant dense<0.000000e+00> : vector<128xf32>
    %130 = vector.multi_reduction <add>, %129, %cst_48 [0] : vector<8x128xf32> to vector<128xf32>
    %131 = vector.shape_cast %130 : vector<128xf32> to vector<1x128xf32>
    %c3 = arith.constant 3 : index
    %c0_49 = arith.constant 0 : index
    %c0_50 = arith.constant 0 : index
    %132 = vector.load %arg2[%c3, %c0_49, %c0_50] : memref<4x8x64xf32, #tpu.memory_space<vmem>>, vector<1x8x64xf32>
    %133 = vector.shape_cast %132 : vector<1x8x64xf32> to vector<8x64xf32>
    %cst_51 = arith.constant dense<0.000000e+00> : vector<8x128xf32>
    %134 = tpu.matmul %133, %113, %cst_51 {dimension_numbers = #tpu.dot_dimension_numbers<[1], [0], [0], [1], [0, 0, 1, 1], [], []>} : vector<8x64xf32>, vector<64x128xf32>, vector<8x128xf32> -> vector<8x128xf32>
    %135 = arith.mulf %134, %107 : vector<8x128xf32>
    %cst_52 = arith.constant dense<0.000000e+00> : vector<128xf32>
    %136 = vector.multi_reduction <add>, %135, %cst_52 [0] : vector<8x128xf32> to vector<128xf32>
    %137 = vector.shape_cast %136 : vector<128xf32> to vector<1x128xf32>
    %138 = tpu.concatenate %119, %125, %131, %137 in 0 : vector<1x128xf32>, vector<1x128xf32>, vector<1x128xf32>, vector<1x128xf32> -> vector<4x128xf32>
    %c0_53 = arith.constant 0 : index
    %c0_54 = arith.constant 0 : index
    %139 = vector.load %arg3[%c0_53, %c0_54] : memref<4x128xf32, #tpu.memory_space<vmem>>, vector<4x128xf32>
    tpu.vector_store %arg3[%c0_53, %c0_54], %138 {strides = array<i32>} : memref<4x128xf32, #tpu.memory_space<vmem>>, vector<4x128xf32>,
    return
  }
  func.func @transform_0(%arg0: i32) -> (i32, i32) {
    %c0_i32 = arith.constant 0 : i32
    %c0_i32_0 = arith.constant 0 : i32
    return %c0_i32, %arg0 : i32, i32
  }
  func.func @transform_1(%arg0: i32) -> (i32, i32, i32) {
    %c0_i32 = arith.constant 0 : i32
    %c0_i32_0 = arith.constant 0 : i32
    %c0_i32_1 = arith.constant 0 : i32
    %c0_i32_2 = arith.constant 0 : i32
    return %c0_i32, %c0_i32_0, %c0_i32_1 : i32, i32, i32
  }
  func.func @transform_2(%arg0: i32) -> (i32, i32) {
    %c0_i32 = arith.constant 0 : i32
    %c0_i32_0 = arith.constant 0 : i32
    return %c0_i32, %arg0 : i32, i32
  }
}

</mosaic_0001>

<llo_original>
// kernel: tpu_custom_call.1
$region0: #{tpu_custom_call.1}
  #allocation0 [shape = 'u32[]', space=smem, size = 0x4, offset = 0x4, fixed_abs, tag = 'smem constant byte address 0x4 - core index']
  #allocation1 [shape = 'u32[144,128]{1,0:T(1,128)}', space=vmem, size = 0x12000, scoped, tag = 'internal scratch']
  %s0 = inlined_call_operand.hbm [shape: f32[3,128], index: 0, kind: input, shape index: {}]
  %s1 = inlined_call_operand.hbm [shape: f32[4,8,64], index: 1, kind: input, shape index: {}]
  %s2 = inlined_call_operand.hbm [shape: f32[4,128], index: 2, kind: output, shape index: {}]
  %s3 = sld [smem:[#allocation0]]
  $region26: #{tpu_custom_call.1} parent=0
    _
  %s5 = ssub.s32 1, %s3
  %s6 = scalar_select 0, %s5, %s3
  $region1: #{tpu_custom_call.1} parent=0
    #allocation2 [shape = 'u8[2048]{0}', space=vmem, size = 0x800, scoped, tag = 'input window, operand 0, single buffered']
    #allocation3 [shape = 's32[1]{0}', space=sflag, size = 0x4, scoped, tag = 'scoped memory for tpu_custom_call.1']
    #allocation4 [shape = 's32[1]{0}', space=sflag, size = 0x4, scoped, tag = 'scoped memory for tpu_custom_call.1']
    #allocation5 [shape = 'u8[16384]{0}', space=vmem, size = 0x4000, scoped, tag = 'input window, operand 1, single buffered']
    #allocation6 [shape = 's32[1]{0}', space=sflag, size = 0x4, scoped, tag = 'scoped memory for tpu_custom_call.1']
    #allocation7 [shape = 'u8[2048]{0}', space=vmem, size = 0x800, scoped, tag = 'output window, operand 0, single buffered']
    %7 = vsyncpa [#allocation3], 0
    %8 = vsyncpa [#allocation6], 0
    %9 = vsyncpa [#allocation4], 0
    // Predicated region
    $region2: #{tpu_custom_call.1} parent=1 // pred_check
      _
    $region3: #{tpu_custom_call.1} parent=1 // pred_check_branch
      %11 = sbr.rel (0) target = $region5
    $region4: #{tpu_custom_call.1} parent=1 // pred_region
      %s13 = ssub.s32 64, 64
      %14 = vsyncadd [#allocation3], %s13
      %s16 = sshll.u32 [#allocation2], 4
      %s17 = int_to_ptr.vmem [resolvable:$true] %s16
      %19 = dma.hbm_to_vmem [thread:$0]  %s0, 64, %s17, [#allocation3]
    $region5: #{tpu_custom_call.1} parent=1 // pred_fallthru
      _
    // Predicated region
    $region6: #{tpu_custom_call.1} parent=1 // pred_check
      _
    $region7: #{tpu_custom_call.1} parent=1 // pred_check_branch
      %21 = sbr.rel (0) target = $region9
    $region8: #{tpu_custom_call.1} parent=1 // pred_region
      %s23 = ssub.s32 512, 512
      %24 = vsyncadd [#allocation6], %s23
      %s25 = sshll.u32 [#allocation5], 4
      %s26 = int_to_ptr.vmem [resolvable:$true] %s25
      %31 = dma.hbm_to_vmem [thread:$0]  %s1, 512, %s26, [#allocation6], 128, 128, 8
    $region9: #{tpu_custom_call.1} parent=1 // pred_fallthru
      _
    // Predicated region
    $region10: #{tpu_custom_call.1} parent=1 // pred_check
      _
    $region11: #{tpu_custom_call.1} parent=1 // pred_check_branch
      %33 = sbr.rel (0) target = $region13
    $region12: #{tpu_custom_call.1} parent=1 // pred_region
      %34 = dma.done [#allocation3], 64
    $region13: #{tpu_custom_call.1} parent=1 // pred_fallthru
      _
    // Predicated region
    $region14: #{tpu_custom_call.1} parent=1 // pred_check
      _
    $region15: #{tpu_custom_call.1} parent=1 // pred_check_branch
      %36 = sbr.rel (0) target = $region17
    $region16: #{tpu_custom_call.1} parent=1 // pred_region
      %37 = dma.done [#allocation6], 512
    $region17: #{tpu_custom_call.1} parent=1 // pred_fallthru
      _
    %v38 = vld [vmem:[#allocation2] sm:$0x1]
    %v39 = vsub.f32 %v38, -1.0
    %v40 = vmul.f32 %v39, 0.5
    %v41 = vmul.f32 %v40, 7.0
    %v42 = vmax.f32 %v41, 0.0
    %v43 = vmin.f32 %v42, 7.0
    %v44 = vfloor.f32 %v43
    %v45 = vmax.f32 %v44, 0.0
    %v46 = vmin.f32 %v45, 6.0
    %v47 = vcvt.f32.s32.to.zero.pseudo %v46
    %v48 = vsub.f32 %v43, %v46
    %v49 = vlaneseq
    %v50 = vshrl.u32 %v49, 7
    %v51 = vlaneseq
    %v52 = vshrl.u32 %v51, 7
    %v53 = vsub.s32 0, %v52
    %v54 = vrot.slane %v47, %v53
    %vm55 = vcmp.eq.s32.totalorder %v50, %v54
    %v56 = vsub.f32 1.0, %v48
    %v57 = vlaneseq
    %v58 = vshrl.u32 %v57, 7
    %v59 = vsub.s32 0, %v58
    %v60 = vrot.slane %v56, %v59
    %v61 = vsel %vm55, %v60, 0.0
    %v62 = vadd.s32 %v47, 1
    %v63 = vlaneseq
    %v64 = vshrl.u32 %v63, 7
    %v65 = vsub.s32 0, %v64
    %v66 = vrot.slane %v62, %v65
    %vm67 = vcmp.eq.s32.totalorder %v50, %v66
    %v68 = vlaneseq
    %v69 = vshrl.u32 %v68, 7
    %v70 = vsub.s32 0, %v69
    %v71 = vrot.slane %v48, %v70
    %v72 = vsel %vm67, %v71, 0.0
    %v73 = vadd.f32 %v61, %v72
    %v74 = vld [vmem:[#allocation2 + $0x1] sm:$0x1]
    %v75 = vsub.f32 %v74, -1.0
    %v76 = vmul.f32 %v75, 0.5
    %v77 = vmul.f32 %v76, 7.0
    %v78 = vmax.f32 %v77, 0.0
    %v79 = vmin.f32 %v78, 7.0
    %v80 = vfloor.f32 %v79
    %v81 = vmax.f32 %v80, 0.0
    %v82 = vmin.f32 %v81, 6.0
    %v83 = vcvt.f32.s32.to.zero.pseudo %v82
    %v84 = vsub.f32 %v79, %v82
    %v85 = vlaneseq
    %v86 = vshrl.u32 %v85, 7
    %v87 = vsub.s32 0, %v86
    %v88 = vrot.slane %v83, %v87
    %vm89 = vcmp.eq.s32.totalorder %v50, %v88
    %v90 = vsub.f32 1.0, %v84
    %v91 = vlaneseq
    %v92 = vshrl.u32 %v91, 7
    %v93 = vsub.s32 0, %v92
    %v94 = vrot.slane %v90, %v93
    %v95 = vsel %vm89, %v94, 0.0
    %v96 = vadd.s32 %v83, 1
    %v97 = vlaneseq
    %v98 = vshrl.u32 %v97, 7
    %v99 = vsub.s32 0, %v98
    %v100 = vrot.slane %v96, %v99
    %vm101 = vcmp.eq.s32.totalorder %v50, %v100
    %v102 = vlaneseq
    %v103 = vshrl.u32 %v102, 7
    %v104 = vsub.s32 0, %v103
    %v105 = vrot.slane %v84, %v104
    %v106 = vsel %vm101, %v105, 0.0
    %v107 = vadd.f32 %v95, %v106
    %v108 = vld [vmem:[#allocation2 + $0x2] sm:$0x1]
    %v109 = vsub.f32 %v108, -1.0
    %v110 = vmul.f32 %v109, 0.5
    %v111 = vmul.f32 %v110, 7.0
    %v112 = vmax.f32 %v111, 0.0
    %v113 = vmin.f32 %v112, 7.0
    %v114 = vfloor.f32 %v113
    %v115 = vmax.f32 %v114, 0.0
    %v116 = vmin.f32 %v115, 6.0
    %v117 = vcvt.f32.s32.to.zero.pseudo %v116
    %v118 = vsub.f32 %v113, %v116
    %v119 = vlaneseq
    %v120 = vshrl.u32 %v119, 7
    %v121 = vsub.s32 0, %v120
    %v122 = vrot.slane %v117, %v121
    %vm123 = vcmp.eq.s32.totalorder %v50, %v122
    %v124 = vsub.f32 1.0, %v118
    %v125 = vlaneseq
    %v126 = vshrl.u32 %v125, 7
    %v127 = vsub.s32 0, %v126
    %v128 = vrot.slane %v124, %v127
    %v129 = vsel %vm123, %v128, 0.0
    %v130 = vadd.s32 %v117, 1
    %v131 = vlaneseq
    %v132 = vshrl.u32 %v131, 7
    %v133 = vsub.s32 0, %v132
    %v134 = vrot.slane %v130, %v133
    %vm135 = vcmp.eq.s32.totalorder %v50, %v134
    %v136 = vlaneseq
    %v137 = vshrl.u32 %v136, 7
    %v138 = vsub.s32 0, %v137
    %v139 = vrot.slane %v118, %v138
    %v140 = vsel %vm135, %v139, 0.0
    %v141 = vadd.f32 %v129, %v140
    %v143 = vcombine.high %v73, %v73
    %v145 = vunpack.c.l.s4 1966171168
    %v146 = vunpack.c.0.s8 %v145
    %v147 = vlaneseq
    %v148 = vshrl.u32 %v147, 7
    %v149 = vsub.s32 %v146, %v148
    %v150 = vrot.slane %v73, %v149
    %v152 = vunpack.c.l.s4 1966171168
    %v153 = vunpack.c.0.s8 %v152
    %v154 = vlaneseq
    %v155 = vshrl.u32 %v154, 7
    %v156 = vsub.s32 %v153, %v155
    %v157 = vrot.slane %v143, %v156
    %v158 = vcombine.high %v150, %v150
    %v159 = vcombine.high %v157, %v157
    %v161 = vunpack.c.l.s4 1966171168
    %v162 = vunpack.c.0.s8 %v161
    %v163 = vlaneseq
    %v164 = vshrl.u32 %v163, 7
    %v165 = vsub.s32 %v162, %v164
    %v166 = vrot.slane %v150, %v165
    %v168 = vunpack.c.l.s4 1966171168
    %v169 = vunpack.c.0.s8 %v168
    %v170 = vlaneseq
    %v171 = vshrl.u32 %v170, 7
    %v172 = vsub.s32 %v169, %v171
    %v173 = vrot.slane %v157, %v172
    %v175 = vunpack.c.l.s4 1966171168
    %v176 = vunpack.c.0.s8 %v175
    %v177 = vlaneseq
    %v178 = vshrl.u32 %v177, 7
    %v179 = vsub.s32 %v176, %v178
    %v180 = vrot.slane %v158, %v179
    %v182 = vunpack.c.l.s4 1966171168
    %v183 = vunpack.c.0.s8 %v182
    %v184 = vlaneseq
    %v185 = vshrl.u32 %v184, 7
    %v186 = vsub.s32 %v183, %v185
    %v187 = vrot.slane %v159, %v186
    %v188 = vcombine.high %v166, %v166
    %v189 = vcombine.high %v173, %v173
    %v190 = vcombine.high %v180, %v180
    %v191 = vcombine.high %v187, %v187
    %v192 = vlaneseq
    %v193 = vshrl.u32 %v192, 7
    %v194 = vsub.s32 0, %v193
    %v195 = vrot.slane %v166, %v194
    %v196 = vlaneseq
    %v197 = vshrl.u32 %v196, 7
    %v198 = vsub.s32 0, %v197
    %v199 = vrot.slane %v180, %v198
    %v200 = vlaneseq
    %v201 = vshrl.u32 %v200, 7
    %v202 = vsub.s32 0, %v201
    %v203 = vrot.slane %v188, %v202
    %v204 = vlaneseq
    %v205 = vshrl.u32 %v204, 7
    %v206 = vsub.s32 0, %v205
    %v207 = vrot.slane %v190, %v206
    %v208 = vlaneseq
    %v209 = vshrl.u32 %v208, 7
    %v210 = vsub.s32 0, %v209
    %v211 = vrot.slane %v173, %v210
    %v212 = vlaneseq
    %v213 = vshrl.u32 %v212, 7
    %v214 = vsub.s32 0, %v213
    %v215 = vrot.slane %v187, %v214
    %v216 = vlaneseq
    %v217 = vshrl.u32 %v216, 7
    %v218 = vsub.s32 0, %v217
    %v219 = vrot.slane %v189, %v218
    %v220 = vlaneseq
    %v221 = vshrl.u32 %v220, 7
    %v222 = vsub.s32 0, %v221
    %v223 = vrot.slane %v191, %v222
    %v232 = vmul.f32 %v195, %v107
    %v233 = vmul.f32 %v199, %v107
    %v234 = vmul.f32 %v203, %v107
    %v235 = vmul.f32 %v207, %v107
    %v236 = vmul.f32 %v211, %v107
    %v237 = vmul.f32 %v215, %v107
    %v238 = vmul.f32 %v219, %v107
    %v239 = vmul.f32 %v223, %v107
    %v240 = vld [vmem:[#allocation5] sm:$0xff]
    %vm241 = vcmask 523264
    %v243 = vsel %vm241, %v240, 0
    %245 = vmatprep.subr.mxu0 0.0
    %246 = vmatpush1.msra.mxu0 %v232
    %247 = vmatprep.subr.mxu0 0.0
    %248 = vmatpush1.msra.mxu0 %v233
    %249 = vmatprep.subr.mxu0 0.0
    %250 = vmatpush1.msra.mxu0 %v234
    %251 = vmatprep.subr.mxu0 0.0
    %252 = vmatpush1.msra.mxu0 %v235
    %253 = vmatprep.subr.mxu0 0.0
    %254 = vmatpush1.msra.mxu0 %v236
    %255 = vmatprep.subr.mxu0 0.0
    %256 = vmatpush1.msra.mxu0 %v237
    %257 = vmatprep.subr.mxu0 0.0
    %258 = vmatpush1.msra.mxu0 %v238
    %259 = vmatprep.subr.mxu0 0.0
    %260 = vmatpush1.msra.mxu0 %v239
    %261 = vmatprep.subr.mxu0 0.0
    %262 = vmatpush1.msra.mxu0 0.0
    %263 = vmatprep.subr.mxu0 0.0
    %264 = vmatpush1.msra.mxu0 0.0
    %265 = vmatprep.subr.mxu0 0.0
    %266 = vmatpush1.msra.mxu0 0.0
    %267 = vmatprep.subr.mxu0 0.0
    %268 = vmatpush1.msra.mxu0 0.0
    %269 = vmatprep.subr.mxu0 0.0
    %270 = vmatpush1.msra.mxu0 0.0
    %271 = vmatprep.subr.mxu0 0.0
    %272 = vmatpush1.msra.mxu0 0.0
    %273 = vmatprep.subr.mxu0 0.0
    %274 = vmatpush1.msra.mxu0 0.0
    %275 = vmatprep.subr.mxu0 0.0
    %276 = vmatpush1.msra.mxu0 0.0
    %277 = vmatprep.subr.mxu0 0.0
    %278 = vmatpush1.msra.mxu0 0.0
    %279 = vmatprep.subr.mxu0 0.0
    %280 = vmatpush1.msra.mxu0 0.0
    %281 = vmatprep.subr.mxu0 0.0
    %282 = vmatpush1.msra.mxu0 0.0
    %283 = vmatprep.subr.mxu0 0.0
    %284 = vmatpush1.msra.mxu0 0.0
    %285 = vmatprep.subr.mxu0 0.0
    %286 = vmatpush1.msra.mxu0 0.0
    %287 = vmatprep.subr.mxu0 0.0
    %288 = vmatpush1.msra.mxu0 0.0
    %289 = vmatprep.subr.mxu0 0.0
    %290 = vmatpush1.msra.mxu0 0.0
    %291 = vmatprep.subr.mxu0 0.0
    %292 = vmatpush1.msra.mxu0 0.0
    %293 = vmatprep.subr.mxu0 0.0
    %294 = vmatpush1.msra.mxu0 0.0
    %295 = vmatprep.subr.mxu0 0.0
    %296 = vmatpush1.msra.mxu0 0.0
    %297 = vmatprep.subr.mxu0 0.0
    %298 = vmatpush1.msra.mxu0 0.0
    %299 = vmatprep.subr.mxu0 0.0
    %300 = vmatpush1.msra.mxu0 0.0
    %301 = vmatprep.subr.mxu0 0.0
    %302 = vmatpush1.msra.mxu0 0.0
    %303 = vmatprep.subr.mxu0 0.0
    %304 = vmatpush1.msra.mxu0 0.0
    %305 = vmatprep.subr.mxu0 0.0
    %306 = vmatpush1.msra.mxu0 0.0
    %307 = vmatprep.subr.mxu0 0.0
    %308 = vmatpush1.msra.mxu0 0.0
    %309 = vmatprep.mubr.f32.mxu0 0.0
    %310 = vmatmul.mubr.f32.gmra.mrb[0].mxu0 %v243
    %v311 = vpop.f32.mrb[0].mxu0
    %v312 = vadd.f32 0.0, %v311
    %v313 = vpop.f32.mrb[0].mxu0
    %314 = vdwg.mxu0
    %v315 = vmul.f32 %v312, %v141
    %v316 = vrot.slane %v315, 4
    %v317 = vadd.f32 %v315, %v316
    %v318 = vrot.slane %v317, 2
    %v319 = vadd.f32 %v317, %v318
    %v320 = vrot.slane %v319, 1
    %v321 = vadd.f32 %v319, %v320
    %s322 = scalar_lea.vmem [#allocation5], 8
    %v323 = vld [vmem:[%s322] sm:$0xff]
    %v325 = vsel %vm241, %v323, 0
    %327 = vmatprep.subr.mxu0 0.0
    %328 = vmatpush1.msra.mxu0 %v232
    %329 = vmatprep.subr.mxu0 0.0
    %330 = vmatpush1.msra.mxu0 %v233
    %331 = vmatprep.subr.mxu0 0.0
    %332 = vmatpush1.msra.mxu0 %v234
    %333 = vmatprep.subr.mxu0 0.0
    %334 = vmatpush1.msra.mxu0 %v235
    %335 = vmatprep.subr.mxu0 0.0
    %336 = vmatpush1.msra.mxu0 %v236
    %337 = vmatprep.subr.mxu0 0.0
    %338 = vmatpush1.msra.mxu0 %v237
    %339 = vmatprep.subr.mxu0 0.0
    %340 = vmatpush1.msra.mxu0 %v238
    %341 = vmatprep.subr.mxu0 0.0
    %342 = vmatpush1.msra.mxu0 %v239
    %343 = vmatprep.subr.mxu0 0.0
    %344 = vmatpush1.msra.mxu0 0.0
    %345 = vmatprep.subr.mxu0 0.0
    %346 = vmatpush1.msra.mxu0 0.0
    %347 = vmatprep.subr.mxu0 0.0
    %348 = vmatpush1.msra.mxu0 0.0
    %349 = vmatprep.subr.mxu0 0.0
    %350 = vmatpush1.msra.mxu0 0.0
    %351 = vmatprep.subr.mxu0 0.0
    %352 = vmatpush1.msra.mxu0 0.0
    %353 = vmatprep.subr.mxu0 0.0
    %354 = vmatpush1.msra.mxu0 0.0
    %355 = vmatprep.subr.mxu0 0.0
    %356 = vmatpush1.msra.mxu0 0.0
    %357 = vmatprep.subr.mxu0 0.0
    %358 = vmatpush1.msra.mxu0 0.0
    %359 = vmatprep.subr.mxu0 0.0
    %360 = vmatpush1.msra.mxu0 0.0
    %361 = vmatprep.subr.mxu0 0.0
    %362 = vmatpush1.msra.mxu0 0.0
    %363 = vmatprep.subr.mxu0 0.0
    %364 = vmatpush1.msra.mxu0 0.0
    %365 = vmatprep.subr.mxu0 0.0
    %366 = vmatpush1.msra.mxu0 0.0
    %367 = vmatprep.subr.mxu0 0.0
    %368 = vmatpush1.msra.mxu0 0.0
    %369 = vmatprep.subr.mxu0 0.0
    %370 = vmatpush1.msra.mxu0 0.0
    %371 = vmatprep.subr.mxu0 0.0
    %372 = vmatpush1.msra.mxu0 0.0
    %373 = vmatprep.subr.mxu0 0.0
    %374 = vmatpush1.msra.mxu0 0.0
    %375 = vmatprep.subr.mxu0 0.0
    %376 = vmatpush1.msra.mxu0 0.0
    %377 = vmatprep.subr.mxu0 0.0
    %378 = vmatpush1.msra.mxu0 0.0
    %379 = vmatprep.subr.mxu0 0.0
    %380 = vmatpush1.msra.mxu0 0.0
    %381 = vmatprep.subr.mxu0 0.0
    %382 = vmatpush1.msra.mxu0 0.0
    %383 = vmatprep.subr.mxu0 0.0
    %384 = vmatpush1.msra.mxu0 0.0
    %385 = vmatprep.subr.mxu0 0.0
    %386 = vmatpush1.msra.mxu0 0.0
    %387 = vmatprep.subr.mxu0 0.0
    %388 = vmatpush1.msra.mxu0 0.0
    %389 = vmatprep.subr.mxu0 0.0
    %390 = vmatpush1.msra.mxu0 0.0
    %391 = vmatprep.mubr.f32.mxu0 0.0
    %392 = vmatmul.mubr.f32.gmra.mrb[0].mxu0 %v325
    %v393 = vpop.f32.mrb[0].mxu0
    %v394 = vadd.f32 0.0, %v393
    %v395 = vpop.f32.mrb[0].mxu0
    %396 = vdwg.mxu0
    %v397 = vmul.f32 %v394, %v141
    %v398 = vrot.slane %v397, 4
    %v399 = vadd.f32 %v397, %v398
    %v400 = vrot.slane %v399, 2
    %v401 = vadd.f32 %v399, %v400
    %v402 = vrot.slane %v401, 1
    %v403 = vadd.f32 %v401, %v402
    %s404 = scalar_lea.vmem [#allocation5], 16
    %v405 = vld [vmem:[%s404] sm:$0xff]
    %v407 = vsel %vm241, %v405, 0
    %409 = vmatprep.subr.mxu0 0.0
    %410 = vmatpush1.msra.mxu0 %v232
    %411 = vmatprep.subr.mxu0 0.0
    %412 = vmatpush1.msra.mxu0 %v233
    %413 = vmatprep.subr.mxu0 0.0
    %414 = vmatpush1.msra.mxu0 %v234
    %415 = vmatprep.subr.mxu0 0.0
    %416 = vmatpush1.msra.mxu0 %v235
    %417 = vmatprep.subr.mxu0 0.0
    %418 = vmatpush1.msra.mxu0 %v236
    %419 = vmatprep.subr.mxu0 0.0
    %420 = vmatpush1.msra.mxu0 %v237
    %421 = vmatprep.subr.mxu0 0.0
    %422 = vmatpush1.msra.mxu0 %v238
    %423 = vmatprep.subr.mxu0 0.0
    %424 = vmatpush1.msra.mxu0 %v239
    %425 = vmatprep.subr.mxu0 0.0
    %426 = vmatpush1.msra.mxu0 0.0
    %427 = vmatprep.subr.mxu0 0.0
    %428 = vmatpush1.msra.mxu0 0.0
    %429 = vmatprep.subr.mxu0 0.0
    %430 = vmatpush1.msra.mxu0 0.0
    %431 = vmatprep.subr.mxu0 0.0
    %432 = vmatpush1.msra.mxu0 0.0
    %433 = vmatprep.subr.mxu0 0.0
    %434 = vmatpush1.msra.mxu0 0.0
    %435 = vmatprep.subr.mxu0 0.0
    %436 = vmatpush1.msra.mxu0 0.0
    %437 = vmatprep.subr.mxu0 0.0
    %438 = vmatpush1.msra.mxu0 0.0
    %439 = vmatprep.subr.mxu0 0.0
    %440 = vmatpush1.msra.mxu0 0.0
    %441 = vmatprep.subr.mxu0 0.0
    %442 = vmatpush1.msra.mxu0 0.0
    %443 = vmatprep.subr.mxu0 0.0
    %444 = vmatpush1.msra.mxu0 0.0
    %445 = vmatprep.subr.mxu0 0.0
    %446 = vmatpush1.msra.mxu0 0.0
    %447 = vmatprep.subr.mxu0 0.0
    %448 = vmatpush1.msra.mxu0 0.0
    %449 = vmatprep.subr.mxu0 0.0
    %450 = vmatpush1.msra.mxu0 0.0
    %451 = vmatprep.subr.mxu0 0.0
    %452 = vmatpush1.msra.mxu0 0.0
    %453 = vmatprep.subr.mxu0 0.0
    %454 = vmatpush1.msra.mxu0 0.0
    %455 = vmatprep.subr.mxu0 0.0
    %456 = vmatpush1.msra.mxu0 0.0
    %457 = vmatprep.subr.mxu0 0.0
    %458 = vmatpush1.msra.mxu0 0.0
    %459 = vmatprep.subr.mxu0 0.0
    %460 = vmatpush1.msra.mxu0 0.0
    %461 = vmatprep.subr.mxu0 0.0
    %462 = vmatpush1.msra.mxu0 0.0
    %463 = vmatprep.subr.mxu0 0.0
    %464 = vmatpush1.msra.mxu0 0.0
    %465 = vmatprep.subr.mxu0 0.0
    %466 = vmatpush1.msra.mxu0 0.0
    %467 = vmatprep.subr.mxu0 0.0
    %468 = vmatpush1.msra.mxu0 0.0
    %469 = vmatprep.subr.mxu0 0.0
    %470 = vmatpush1.msra.mxu0 0.0
    %471 = vmatprep.subr.mxu0 0.0
    %472 = vmatpush1.msra.mxu0 0.0
    %473 = vmatprep.mubr.f32.mxu0 0.0
    %474 = vmatmul.mubr.f32.gmra.mrb[0].mxu0 %v407
    %v475 = vpop.f32.mrb[0].mxu0
    %v476 = vadd.f32 0.0, %v475
    %v477 = vpop.f32.mrb[0].mxu0
    %478 = vdwg.mxu0
    %v479 = vmul.f32 %v476, %v141
    %v480 = vrot.slane %v479, 4
    %v481 = vadd.f32 %v479, %v480
    %v482 = vrot.slane %v481, 2
    %v483 = vadd.f32 %v481, %v482
    %v484 = vrot.slane %v483, 1
    %v485 = vadd.f32 %v483, %v484
    %s486 = scalar_lea.vmem [#allocation5], 24
    %v487 = vld [vmem:[%s486] sm:$0xff]
    %v489 = vsel %vm241, %v487, 0
    %491 = vmatprep.subr.mxu0 0.0
    %492 = vmatpush1.msra.mxu0 %v232
    %493 = vmatprep.subr.mxu0 0.0
    %494 = vmatpush1.msra.mxu0 %v233
    %495 = vmatprep.subr.mxu0 0.0
    %496 = vmatpush1.msra.mxu0 %v234
    %497 = vmatprep.subr.mxu0 0.0
    %498 = vmatpush1.msra.mxu0 %v235
    %499 = vmatprep.subr.mxu0 0.0
    %500 = vmatpush1.msra.mxu0 %v236
    %501 = vmatprep.subr.mxu0 0.0
    %502 = vmatpush1.msra.mxu0 %v237
    %503 = vmatprep.subr.mxu0 0.0
    %504 = vmatpush1.msra.mxu0 %v238
    %505 = vmatprep.subr.mxu0 0.0
    %506 = vmatpush1.msra.mxu0 %v239
    %507 = vmatprep.subr.mxu0 0.0
    %508 = vmatpush1.msra.mxu0 0.0
    %509 = vmatprep.subr.mxu0 0.0
    %510 = vmatpush1.msra.mxu0 0.0
    %511 = vmatprep.subr.mxu0 0.0
    %512 = vmatpush1.msra.mxu0 0.0
    %513 = vmatprep.subr.mxu0 0.0
    %514 = vmatpush1.msra.mxu0 0.0
    %515 = vmatprep.subr.mxu0 0.0
    %516 = vmatpush1.msra.mxu0 0.0
    %517 = vmatprep.subr.mxu0 0.0
    %518 = vmatpush1.msra.mxu0 0.0
    %519 = vmatprep.subr.mxu0 0.0
    %520 = vmatpush1.msra.mxu0 0.0
    %521 = vmatprep.subr.mxu0 0.0
    %522 = vmatpush1.msra.mxu0 0.0
    %523 = vmatprep.subr.mxu0 0.0
    %524 = vmatpush1.msra.mxu0 0.0
    %525 = vmatprep.subr.mxu0 0.0
    %526 = vmatpush1.msra.mxu0 0.0
    %527 = vmatprep.subr.mxu0 0.0
    %528 = vmatpush1.msra.mxu0 0.0
    %529 = vmatprep.subr.mxu0 0.0
    %530 = vmatpush1.msra.mxu0 0.0
    %531 = vmatprep.subr.mxu0 0.0
    %532 = vmatpush1.msra.mxu0 0.0
    %533 = vmatprep.subr.mxu0 0.0
    %534 = vmatpush1.msra.mxu0 0.0
    %535 = vmatprep.subr.mxu0 0.0
    %536 = vmatpush1.msra.mxu0 0.0
    %537 = vmatprep.subr.mxu0 0.0
    %538 = vmatpush1.msra.mxu0 0.0
    %539 = vmatprep.subr.mxu0 0.0
    %540 = vmatpush1.msra.mxu0 0.0
    %541 = vmatprep.subr.mxu0 0.0
    %542 = vmatpush1.msra.mxu0 0.0
    %543 = vmatprep.subr.mxu0 0.0
    %544 = vmatpush1.msra.mxu0 0.0
    %545 = vmatprep.subr.mxu0 0.0
    %546 = vmatpush1.msra.mxu0 0.0
    %547 = vmatprep.subr.mxu0 0.0
    %548 = vmatpush1.msra.mxu0 0.0
    %549 = vmatprep.subr.mxu0 0.0
    %550 = vmatpush1.msra.mxu0 0.0
    %551 = vmatprep.subr.mxu0 0.0
    %552 = vmatpush1.msra.mxu0 0.0
    %553 = vmatprep.subr.mxu0 0.0
    %554 = vmatpush1.msra.mxu0 0.0
    %555 = vmatprep.mubr.f32.mxu0 0.0
    %556 = vmatmul.mubr.f32.gmra.mrb[0].mxu0 %v489
    %v557 = vpop.f32.mrb[0].mxu0
    %v558 = vadd.f32 0.0, %v557
    %v559 = vpop.f32.mrb[0].mxu0
    %560 = vdwg.mxu0
    %v561 = vmul.f32 %v558, %v141
    %v562 = vrot.slane %v561, 4
    %v563 = vadd.f32 %v561, %v562
    %v564 = vrot.slane %v563, 2
    %v565 = vadd.f32 %v563, %v564
    %v566 = vrot.slane %v565, 1
    %v567 = vadd.f32 %v565, %v566
    %vm568 = vcmask 1040384
    %v569 = vsel %vm568, %v321, %v403
    %vm570 = vcmask 1041408
    %v571 = vsel %vm570, %v569, %v485
    %vm572 = vcmask 1042432
    %v573 = vsel %vm572, %v571, %v567
    %574 = vst [vmem:[#allocation7] sm:$0xf] %v573
    // Predicated region
    $region18: #{tpu_custom_call.1} parent=1 // pred_check
      _
    $region19: #{tpu_custom_call.1} parent=1 // pred_check_branch
      %576 = sbr.rel (0) target = $region21
    $region20: #{tpu_custom_call.1} parent=1 // pred_region
      %s578 = ssub.s32 64, 64
      %579 = vsyncadd [#allocation4], %s578
      %s581 = sshll.u32 [#allocation7], 4
      %s582 = int_to_ptr.vmem [resolvable:$true] %s581
      %584 = dma.vmem_to_hbm [thread:$0]  %s582, 64, %s2, [#allocation4]
    $region21: #{tpu_custom_call.1} parent=1 // pred_fallthru
      _
    // Predicated region
    $region22: #{tpu_custom_call.1} parent=1 // pred_check
      _
    $region23: #{tpu_custom_call.1} parent=1 // pred_check_branch
      %586 = sbr.rel (0) target = $region25
    $region24: #{tpu_custom_call.1} parent=1 // pred_region
      %587 = dma.done [#allocation4], 64
    $region25: #{tpu_custom_call.1} parent=1 // pred_fallthru
      _
    %588 = vsyncpa [#allocation3], 1
    %589 = vsyncpa [#allocation6], 1
    %590 = vsyncpa [#allocation4], 1

</llo_original>
